<compile_context>
chip_gen: v7x
topology: tpu7x:2x2x1
jax: 0.10.0
libtpu: 0.0.40
codegen_flags: <defaults>
</compile_context>

<pallas_src>
import functools

import numpy as np
import jax
import jax.numpy as jnp
from jax import lax
from jax.experimental import pallas as pl
from jax.experimental.pallas import tpu as pltpu


_WIDTH_TILE = 256  # lane tile when width-tiling kicks in (keeps cb/cr blocks 128-lane dense)


def _chroma_kernel(img_ref, sy_ref, sc_ref, y_ref, cb_ref, cr_ref, *,
                   tw, width, wide, split, mask_width):
    f32 = jnp.float32
    lanes3 = 3 * tw
    tw2 = tw // 2

    # Even / odd source rows of this tile, channels still interleaved: (th2, 3*tw).
    if wide:
        xe = img_ref[0, :, 0, :].astype(f32)
        xo = img_ref[0, :, 1, :].astype(f32)
    else:
        x = img_ref[0]                       # (th2, 6*tw): [row 2i | row 2i+1]
        xe = x[:, :lanes3].astype(f32)
        xo = x[:, lanes3:].astype(f32)

    if mask_width:
        # Last width tile may be partial: zero the out-of-range lanes so garbage
        # (possibly NaN) from the padded region cannot pollute the matmuls.
        k = pl.program_id(2)
        valid = 3 * jnp.minimum(tw, width - k * tw)
        lane = lax.broadcasted_iota(jnp.int32, xe.shape, 1)
        keep = lane < valid
        xe = jnp.where(keep, xe, 0.0)
        xo = jnp.where(keep, xo, 0.0)

    sy = sy_ref[...]                         # (3*tw, tw) bf16 one-hot (luma select)
    sc = sc_ref[...]                         # (3*tw, tw) bf16 0.25-pairs ([cb | cr])

    def select(v, s):
        # f32 -> bf16 hi/lo split keeps ~19 significant bits through the bf16 MXU
        # path (error ~2^-18 rel), using only plain 1-pass bf16 matmuls.
        hi = v.astype(jnp.bfloat16)
        out = jnp.dot(hi, s, preferred_element_type=jnp.float32)
        if split:
            lo = (v - hi.astype(f32)).astype(jnp.bfloat16)
            out = out + jnp.dot(lo, s, preferred_element_type=jnp.float32)
        return out

    # Luma plane: one-hot lane selection of channel 0 for both rows of each pair.
    ye = select(xe, sy)                      # (th2, tw)
    yo = select(xo, sy)                      # (th2, tw)
    if wide:
        y_ref[0, :, 0, :] = ye.astype(y_ref.dtype)
        y_ref[0, :, 1, :] = yo.astype(y_ref.dtype)
    else:
        y_ref[0, :, :tw] = ye.astype(y_ref.dtype)
        y_ref[0, :, tw:] = yo.astype(y_ref.dtype)

    # Chroma: exact vertical pair-sum on the VPU, then horizontal pair select+mean
    # (0.25 weights) on the MXU -> 0.25 * (2x2 window sum).
    rows = xe + xo                           # (th2, 3*tw), exact f32
    cbcr = select(rows, sc)                  # (th2, tw): [cb | cr]
    cb_ref[0] = cbcr[:, :tw2].astype(cb_ref.dtype)
    cr_ref[0] = cbcr[:, tw2:].astype(cr_ref.dtype)


def chroma_subsampling(image, *, target_block_bytes=8 << 20):
    """image: (B, H, W, 3). Returns (y, cb, cr) matching the PyTorch module."""
    B, H, W, C = image.shape
    if C != 3:
        raise ValueError("chroma_subsampling expects a trailing channel dim of 3")
    # TODO(synk): support odd H/W by dropping the trailing row/col (AvgPool2d floor).
    if H % 2 or W % 2:
        raise ValueError("chroma_subsampling expects even height and width")

    orig_dtype = image.dtype
    if image.dtype not in (jnp.float32, jnp.bfloat16, jnp.float16):
        image = image.astype(jnp.float32)
    dtype = image.dtype
    isz = jnp.dtype(dtype).itemsize
    H2, W2 = H // 2, W // 2

    # ---- layout: free reshape, no HBM transpose -------------------------------
    wide = W > _WIDTH_TILE
    if wide:
        tw = _WIDTH_TILE
        nw = pl.cdiv(W, tw)
        img = image.reshape(B, H2, 2, 3 * W)     # free view
    else:
        tw = W
        nw = 1
        img = image.reshape(B, H2, 6 * W)        # free view (row pairs in lanes)
    tw2 = tw // 2
    mask_width = (W % tw) != 0

    # ---- row tiling (th2 = pooled-output rows per grid step) ------------------
    q2 = 8 if isz >= 4 else 16                   # sublane quantum (f32 / bf16)
    sublanes = 8 if isz >= 4 else 16
    pad = (sublanes // 2) if wide else 1         # (2, lanes) minor dims pad to `sublanes`
    # per pooled row of one block: img + y + cb + cr bytes (incl. layout padding)
    bytes_per_row = 6 * tw * isz * pad + 2 * tw * isz * pad + tw * isz
    cap = max(q2, target_block_bytes // bytes_per_row)
    cap -= cap % q2
    th2 = H2 if H2 <= cap else cap
    nh = pl.cdiv(H2, th2)

    # ---- constant selection matrices (all entries exact in bf16) --------------
    sy_np = np.zeros((3 * tw, tw), np.float32)
    sy_np[3 * np.arange(tw), np.arange(tw)] = 1.0
    sc_np = np.zeros((3 * tw, tw), np.float32)
    j = np.arange(tw2)
    sc_np[6 * j + 1, j] = 0.25                   # cb: channel 1, columns 2j / 2j+1
    sc_np[6 * j + 4, j] = 0.25
    sc_np[6 * j + 2, tw2 + j] = 0.25             # cr: channel 2
    sc_np[6 * j + 5, tw2 + j] = 0.25
    sy = jnp.asarray(sy_np, jnp.bfloat16)
    sc = jnp.asarray(sc_np, jnp.bfloat16)

    split = isz >= 4                             # hi/lo bf16 split only for >=32-bit inputs

    if wide:
        y_shape = jax.ShapeDtypeStruct((B, H2, 2, W), dtype)
        y_spec = pl.BlockSpec((1, th2, 2, tw), lambda b, i, k: (b, i, 0, k))
    else:
        y_shape = jax.ShapeDtypeStruct((B, H2, 2 * W), dtype)
        y_spec = pl.BlockSpec((1, th2, 2 * W), lambda b, i, k: (b, i, 0))

    kernel = functools.partial(_chroma_kernel, tw=tw, width=W, wide=wide,
                               split=split, mask_width=mask_width)

    # VMEM: double-buffered blocks + resident constants, with headroom; capped so
    # it always fits v7x's 64 MiB physical VMEM.
    img_blk = th2 * 6 * tw * isz * pad
    y_blk = th2 * 2 * tw * isz * pad
    cbcr_blk = 2 * th2 * tw2 * isz
    const_bytes = 2 * (3 * tw) * tw * 2
    est = 2 * (img_blk + y_blk + cbcr_blk) + 2 * const_bytes
    vmem_limit = int(min(max(2 * est, 32 << 20), 48 << 20))

    y, cb, cr = pl.pallas_call(
        kernel,
        out_shape=(y_shape,
                   jax.ShapeDtypeStruct((B, H2, W2), dtype),
                   jax.ShapeDtypeStruct((B, H2, W2), dtype)),
        grid=(B, nh, nw),
        in_specs=[
            (pl.BlockSpec((1, th2, 2, 3 * tw), lambda b, i, k: (b, i, 0, k)) if wide
             else pl.BlockSpec((1, th2, 6 * tw), lambda b, i, k: (b, i, k))),
            pl.BlockSpec((3 * tw, tw), lambda b, i, k: (0, 0)),   # sy (resident constant)
            pl.BlockSpec((3 * tw, tw), lambda b, i, k: (0, 0)),   # sc (resident constant)
        ],
        out_specs=(
            y_spec,
            pl.BlockSpec((1, th2, tw2), lambda b, i, k: (b, i, k)),
            pl.BlockSpec((1, th2, tw2), lambda b, i, k: (b, i, k)),
        ),
        compiler_params=pltpu.CompilerParams(
            dimension_semantics=("parallel", "parallel", "parallel"),
            vmem_limit_bytes=vmem_limit,
        ),
    )(img, sy, sc)

    y = y.reshape(B, H, W)                       # free reshape back to (B, H, W)
    if orig_dtype != dtype:
        y, cb, cr = (t.astype(orig_dtype) for t in (y, cb, cr))
    return y, cb, cr


if __name__ == "__main__":
    key = jax.random.PRNGKey(0)
    B, H, W = 2, 16, 16
    image = jax.random.uniform(key, (B, H, W, 3), dtype=jnp.float32)

    fn = jax.jit(chroma_subsampling)
    y, cb, cr = jax.block_until_ready(fn(image))

    # Pure-JAX reference mirroring the PyTorch forward exactly.
    ref_y = image[:, :, :, 0]
    chw = jnp.transpose(image, (0, 3, 1, 2))

    def ref_pool(x):
        b, h, w = x.shape
        return x.reshape(b, h // 2, 2, w // 2, 2).mean(axis=(2, 4))

    ref_cb = ref_pool(chw[:, 1])
    ref_cr = ref_pool(chw[:, 2])

    np.testing.assert_allclose(np.asarray(y), np.asarray(ref_y), rtol=0, atol=1e-4)
    np.testing.assert_allclose(np.asarray(cb), np.asarray(ref_cb), rtol=0, atol=1e-4)
    np.testing.assert_allclose(np.asarray(cr), np.asarray(ref_cr), rtol=0, atol=1e-4)

    print("KERNEL_OK")
</pallas_src>

<mosaic_0001>
module attributes {stable_mosaic.version = 11 : i64} {
  func.func @_chroma_kernel(%arg0: i32, %arg1: i32, %arg2: i32, %arg3: memref<1x8x96xf32, #tpu.memory_space<vmem>>, %arg4: memref<48x16xbf16, #tpu.memory_space<vmem>>, %arg5: memref<48x16xbf16, #tpu.memory_space<vmem>>, %arg6: memref<1x8x32xf32, #tpu.memory_space<vmem>>, %arg7: memref<1x8x8xf32, #tpu.memory_space<vmem>>, %arg8: memref<1x8x8xf32, #tpu.memory_space<vmem>>) attributes {dimension_semantics = [#tpu.dimension_semantics<parallel>, #tpu.dimension_semantics<parallel>, #tpu.dimension_semantics<parallel>], iteration_bounds = array<i64: 2, 1, 1>, scalar_prefetch = 0 : i64, scratch_operands = 0 : i64, tpu.core_type = #tpu.core_type<tc>, window_params = [{transform_indices = @transform_0, window_bounds = array<i64: 1, 8, 96>}, {pipeline_mode = #tpu.pipeline_mode<synchronous>, transform_indices = @transform_1, window_bounds = array<i64: 48, 16>}, {pipeline_mode = #tpu.pipeline_mode<synchronous>, transform_indices = @transform_2, window_bounds = array<i64: 48, 16>}, {transform_indices = @transform_3, window_bounds = array<i64: 1, 8, 32>}, {transform_indices = @transform_4, window_bounds = array<i64: 1, 8, 8>}, {transform_indices = @transform_5, window_bounds = array<i64: 1, 8, 8>}]} {
    %c0 = arith.constant 0 : index
    %c0_0 = arith.constant 0 : index
    %c0_1 = arith.constant 0 : index
    %0 = vector.load %arg3[%c0, %c0_0, %c0_1] : memref<1x8x96xf32, #tpu.memory_space<vmem>>, vector<1x8x96xf32>
    %1 = vector.shape_cast %0 : vector<1x8x96xf32> to vector<8x96xf32>
    %2 = vector.extract_strided_slice %1 {offsets = [0, 0], sizes = [8, 48], strides = [1, 1]} : vector<8x96xf32> to vector<8x48xf32>
    %3 = vector.extract_strided_slice %1 {offsets = [0, 48], sizes = [8, 48], strides = [1, 1]} : vector<8x96xf32> to vector<8x48xf32>
    %c0_2 = arith.constant 0 : index
    %c0_3 = arith.constant 0 : index
    %4 = vector.load %arg4[%c0_2, %c0_3] : memref<48x16xbf16, #tpu.memory_space<vmem>>, vector<48x16xbf16>
    %c0_4 = arith.constant 0 : index
    %c0_5 = arith.constant 0 : index
    %5 = vector.load %arg5[%c0_4, %c0_5] : memref<48x16xbf16, #tpu.memory_space<vmem>>, vector<48x16xbf16>
    %6 = arith.truncf %2 : vector<8x48xf32> to vector<8x48xbf16>
    %cst = arith.constant dense<0.000000e+00> : vector<8x16xf32>
    %7 = tpu.matmul %6, %4, %cst {dimension_numbers = #tpu.dot_dimension_numbers<[1], [0], [0], [1], [0, 0, 1, 1], [], []>} : vector<8x48xbf16>, vector<48x16xbf16>, vector<8x16xf32> -> vector<8x16xf32>
    %8 = arith.extf %6 : vector<8x48xbf16> to vector<8x48xf32>
    %9 = arith.subf %2, %8 : vector<8x48xf32>
    %10 = arith.truncf %9 : vector<8x48xf32> to vector<8x48xbf16>
    %cst_6 = arith.constant dense<0.000000e+00> : vector<8x16xf32>
    %11 = tpu.matmul %10, %4, %cst_6 {dimension_numbers = #tpu.dot_dimension_numbers<[1], [0], [0], [1], [0, 0, 1, 1], [], []>} : vector<8x48xbf16>, vector<48x16xbf16>, vector<8x16xf32> -> vector<8x16xf32>
    %12 = arith.addf %7, %11 : vector<8x16xf32>
    %13 = arith.truncf %3 : vector<8x48xf32> to vector<8x48xbf16>
    %cst_7 = arith.constant dense<0.000000e+00> : vector<8x16xf32>
    %14 = tpu.matmul %13, %4, %cst_7 {dimension_numbers = #tpu.dot_dimension_numbers<[1], [0], [0], [1], [0, 0, 1, 1], [], []>} : vector<8x48xbf16>, vector<48x16xbf16>, vector<8x16xf32> -> vector<8x16xf32>
    %15 = arith.extf %13 : vector<8x48xbf16> to vector<8x48xf32>
    %16 = arith.subf %3, %15 : vector<8x48xf32>
    %17 = arith.truncf %16 : vector<8x48xf32> to vector<8x48xbf16>
    %cst_8 = arith.constant dense<0.000000e+00> : vector<8x16xf32>
    %18 = tpu.matmul %17, %4, %cst_8 {dimension_numbers = #tpu.dot_dimension_numbers<[1], [0], [0], [1], [0, 0, 1, 1], [], []>} : vector<8x48xbf16>, vector<48x16xbf16>, vector<8x16xf32> -> vector<8x16xf32>
    %19 = arith.addf %14, %18 : vector<8x16xf32>
    %c0_9 = arith.constant 0 : index
    %c0_10 = arith.constant 0 : index
    %c0_11 = arith.constant 0 : index
    %20 = vector.load %arg6[%c0_9, %c0_10, %c0_11] : memref<1x8x32xf32, #tpu.memory_space<vmem>>, vector<1x8x16xf32>
    %21 = vector.shape_cast %20 : vector<1x8x16xf32> to vector<8x16xf32>
    %22 = vector.shape_cast %12 : vector<8x16xf32> to vector<1x8x16xf32>
    tpu.vector_store %arg6[%c0_9, %c0_10, %c0_11], %22 {strides = array<i32>} : memref<1x8x32xf32, #tpu.memory_space<vmem>>, vector<1x8x16xf32>,
    %c0_12 = arith.constant 0 : index
    %c0_13 = arith.constant 0 : index
    %c16 = arith.constant 16 : index
    %23 = vector.load %arg6[%c0_12, %c0_13, %c16] : memref<1x8x32xf32, #tpu.memory_space<vmem>>, vector<1x8x16xf32>
    %24 = vector.shape_cast %23 : vector<1x8x16xf32> to vector<8x16xf32>
    %25 = vector.shape_cast %19 : vector<8x16xf32> to vector<1x8x16xf32>
    tpu.vector_store %arg6[%c0_12, %c0_13, %c16], %25 {strides = array<i32>} : memref<1x8x32xf32, #tpu.memory_space<vmem>>, vector<1x8x16xf32>,
    %26 = arith.addf %2, %3 : vector<8x48xf32>
    %27 = arith.truncf %26 : vector<8x48xf32> to vector<8x48xbf16>
    %cst_14 = arith.constant dense<0.000000e+00> : vector<8x16xf32>
    %28 = tpu.matmul %27, %5, %cst_14 {dimension_numbers = #tpu.dot_dimension_numbers<[1], [0], [0], [1], [0, 0, 1, 1], [], []>} : vector<8x48xbf16>, vector<48x16xbf16>, vector<8x16xf32> -> vector<8x16xf32>
    %29 = arith.extf %27 : vector<8x48xbf16> to vector<8x48xf32>
    %30 = arith.subf %26, %29 : vector<8x48xf32>
    %31 = arith.truncf %30 : vector<8x48xf32> to vector<8x48xbf16>
    %cst_15 = arith.constant dense<0.000000e+00> : vector<8x16xf32>
    %32 = tpu.matmul %31, %5, %cst_15 {dimension_numbers = #tpu.dot_dimension_numbers<[1], [0], [0], [1], [0, 0, 1, 1], [], []>} : vector<8x48xbf16>, vector<48x16xbf16>, vector<8x16xf32> -> vector<8x16xf32>
    %33 = arith.addf %28, %32 : vector<8x16xf32>
    %34 = vector.extract_strided_slice %33 {offsets = [0, 0], sizes = [8, 8], strides = [1, 1]} : vector<8x16xf32> to vector<8x8xf32>
    %c0_16 = arith.constant 0 : index
    %c0_17 = arith.constant 0 : index
    %c0_18 = arith.constant 0 : index
    %35 = vector.load %arg7[%c0_16, %c0_17, %c0_18] : memref<1x8x8xf32, #tpu.memory_space<vmem>>, vector<1x8x8xf32>
    %36 = vector.shape_cast %35 : vector<1x8x8xf32> to vector<8x8xf32>
    %37 = vector.shape_cast %34 : vector<8x8xf32> to vector<1x8x8xf32>
    tpu.vector_store %arg7[%c0_16, %c0_17, %c0_18], %37 {strides = array<i32>} : memref<1x8x8xf32, #tpu.memory_space<vmem>>, vector<1x8x8xf32>,
    %38 = vector.extract_strided_slice %33 {offsets = [0, 8], sizes = [8, 8], strides = [1, 1]} : vector<8x16xf32> to vector<8x8xf32>
    %c0_19 = arith.constant 0 : index
    %c0_20 = arith.constant 0 : index
    %c0_21 = arith.constant 0 : index
    %39 = vector.load %arg8[%c0_19, %c0_20, %c0_21] : memref<1x8x8xf32, #tpu.memory_space<vmem>>, vector<1x8x8xf32>
    %40 = vector.shape_cast %39 : vector<1x8x8xf32> to vector<8x8xf32>
    %41 = vector.shape_cast %38 : vector<8x8xf32> to vector<1x8x8xf32>
    tpu.vector_store %arg8[%c0_19, %c0_20, %c0_21], %41 {strides = array<i32>} : memref<1x8x8xf32, #tpu.memory_space<vmem>>, vector<1x8x8xf32>,
    return
  }
  func.func @transform_0(%arg0: i32, %arg1: i32, %arg2: i32) -> (i32, i32, i32) {
    %c0_i32 = arith.constant 0 : i32
    return %arg0, %arg1, %arg2 : i32, i32, i32
  }
  func.func @transform_1(%arg0: i32, %arg1: i32, %arg2: i32) -> (i32, i32) {
    %c0_i32 = arith.constant 0 : i32
    %c0_i32_0 = arith.constant 0 : i32
    %c0_i32_1 = arith.constant 0 : i32
    return %c0_i32, %c0_i32_0 : i32, i32
  }
  func.func @transform_2(%arg0: i32, %arg1: i32, %arg2: i32) -> (i32, i32) {
    %c0_i32 = arith.constant 0 : i32
    %c0_i32_0 = arith.constant 0 : i32
    %c0_i32_1 = arith.constant 0 : i32
    return %c0_i32, %c0_i32_0 : i32, i32
  }
  func.func @transform_3(%arg0: i32, %arg1: i32, %arg2: i32) -> (i32, i32, i32) {
    %c0_i32 = arith.constant 0 : i32
    %c0_i32_0 = arith.constant 0 : i32
    return %arg0, %arg1, %c0_i32 : i32, i32, i32
  }
  func.func @transform_4(%arg0: i32, %arg1: i32, %arg2: i32) -> (i32, i32, i32) {
    %c0_i32 = arith.constant 0 : i32
    return %arg0, %arg1, %arg2 : i32, i32, i32
  }
  func.func @transform_5(%arg0: i32, %arg1: i32, %arg2: i32) -> (i32, i32, i32) {
    %c0_i32 = arith.constant 0 : i32
    return %arg0, %arg1, %arg2 : i32, i32, i32
  }
}

</mosaic_0001>

<llo_original>
// kernel: chroma_subsampling.1
$region0: #{chroma_subsampling.1}
  #allocation0 [shape = 'u32[]', space=smem, size = 0x4, offset = 0x4, fixed_abs, tag = 'smem constant byte address 0x4 - core index']
  #allocation1 [shape = 'u32[144,128]{1,0:T(1,128)}', space=vmem, size = 0x12000, scoped, tag = 'internal scratch']
  %s0 = inlined_call_operand.vmem [shape: f32[2,8,96], index: 0, kind: input, shape index: {}]
  %s1 = inlined_call_operand.vmem [shape: bf16[48,16], index: 1, kind: input, shape index: {}]
  %s2 = inlined_call_operand.vmem [shape: bf16[48,16], index: 2, kind: input, shape index: {}]
  %s3 = inlined_call_operand.vmem [shape: f32[2,8,32], index: 3, kind: output, shape index: {0}]
  %s4 = inlined_call_operand.hbm [shape: f32[2,8,8], index: 4, kind: output, shape index: {1}]
  %s5 = inlined_call_operand.hbm [shape: f32[2,8,8], index: 5, kind: output, shape index: {2}]
  %6 = xla_tuple %s3, %s4, %s5
  %s7 = sld [smem:[#allocation0]]
  $region61: #{chroma_subsampling.1} parent=0
    _
  %s9 = ssub.s32 1, %s7
  %s10 = scalar_select 0, %s9, %s7
  $region1: #{chroma_subsampling.1} parent=0
    #allocation2 [shape = 'u8[8192]{0}', space=vmem, size = 0x2000, scoped, tag = 'output window, operand 1']
    #allocation3 [shape = 's32[2]{0}', space=sflag, size = 0x8, scoped, tag = 'scoped memory for chroma_subsampling.1']
    #allocation4 [shape = 'u8[8192]{0}', space=vmem, size = 0x2000, scoped, tag = 'output window, operand 2']
    #allocation5 [shape = 's32[2]{0}', space=sflag, size = 0x8, scoped, tag = 'scoped memory for chroma_subsampling.1']
    %11 = vsyncpa [#allocation3], 0
    %s12 = scalar_lea.sflag [#allocation3], 1
    %13 = vsyncpa %s12, 0
    %14 = vsyncpa [#allocation5], 0
    %s15 = scalar_lea.sflag [#allocation5], 1
    %16 = vsyncpa %s15, 0
    loop: start=0, step=1, limit=4
    $region2: #{chroma_subsampling.1} parent=1 // loop_pre_header
      _
    $region3: #{chroma_subsampling.1} parent=1 // loop_header
      %s18 = sphi 0, %s22
      %p19 = scmp.ge.s32.totalorder %s18, 4
      %s25 = sphi 0, %s44
      %s26 = sphi 0, %s40
      %s27 = sphi 0, %s36
      %s28 = sphi 0, %s25
      %s29 = sphi 0, %s26
      %s30 = sphi 0, %s27
      %s31 = sphi 0, %s28
      %s32 = sphi 0, %s29
      %s33 = sphi 0, %s30
      %s51 = sphi 0, %s53
      %s54 = sphi 0, %s51
      %s55 = sphi 0, %s54
      %s71 = sphi 0, %s55
      %s75 = sphi 0, %s75
      %s77 = sphi 0, %s75
      %s78 = sphi 0, %s77
      %s92 = sphi 0, %s78
      %s96 = sphi 0, %s96
      %s98 = sphi 0, %s96
      %s99 = sphi 0, %s98
      %s113 = sphi 0, %s99
      %s121 = sphi 0, %s123
      %s124 = sphi 0, %s121
      %s125 = sphi 0, %s124
      %s141 = sphi 0, %s125
      %s151 = sphi 0, %s153
      %s154 = sphi 0, %s151
      %s155 = sphi 0, %s154
      %s171 = sphi 0, %s155
      %s181 = sphi 0, %s183
      %s184 = sphi 0, %s181
      %s185 = sphi 0, %s184
      %s201 = sphi 0, %s185
    $region4: #{chroma_subsampling.1} parent=1 // loop_header_branch
      %21 = sbr.rel (%p19) target = $region8
    $region5: #{chroma_subsampling.1} parent=1 // loop_body
      %s23 = ssub.s32 %s18, 1
      %s24 = ssub.s32 %s18, 2
      %s34 = sadd.s32 1, %s27
      %p35 = scmp.ge.s32.totalorder %s34, 1
      %s36 = scalar_select %p35, 0, %s34
      %s37 = sadd.s32 1, %s26
      %s38 = scalar_select %p35, %s37, %s26
      %p39 = scmp.ge.s32.totalorder %s38, 1
      %s40 = scalar_select %p39, 0, %s38
      %s41 = sadd.s32 1, %s25
      %s42 = scalar_select %p39, %s41, %s25
      %p43 = scmp.ge.s32.totalorder %s42, 2
      %s44 = scalar_select %p43, 0, %s42
      %s45 = ssub.s32 %s25, %s44
      %s46 = ssub.s32 %s26, %s40
      %s47 = sor.u32 %s45, %s46
      %s48 = ssub.s32 %s27, %s36
      %s49 = sor.u32 %s47, %s48
      %p50 = scmp.eq.s32.totalorder %s49, 0
      %s52 = sadd.s32 %s51, 1
      %s53 = scalar_select %p50, %s51, %s52
      %p56 = pneg %p50
      %p57 = scmp.eq.s32.totalorder %s18, 1
      %p58 = por %p56, %p57
      %p59 = scmp.ne.s32.totalorder %s51, %s54
      %p60 = scmp.eq.s32.totalorder %s18, 0
      %p61 = por %p59, %p60
      %p62 = scmp.ne.s32.totalorder %s51, %s54
      %p63 = scmp.eq.s32.totalorder %s23, 1
      %p64 = por %p62, %p63
      %p65 = scmp.ne.s32.totalorder %s54, %s55
      %p66 = scmp.eq.s32.totalorder %s23, 0
      %p67 = por %p65, %p66
      %p68 = scmp.ne.s32.totalorder %s54, %s55
      %p69 = scmp.eq.s32.totalorder %s24, 1
      %p70 = por %p68, %p69
      %p72 = scmp.ne.s32.totalorder %s55, %s71
      %p73 = scmp.eq.s32.totalorder %s24, 0
      %p74 = por %p72, %p73
      %s76 = sadd.s32 %s75, 1
      %p79 = scmp.eq.s32.totalorder %s18, 1
      %p80 = scmp.ne.s32.totalorder %s75, %s77
      %p81 = scmp.eq.s32.totalorder %s18, 0
      %p82 = por %p80, %p81
      %p83 = scmp.ne.s32.totalorder %s75, %s77
      %p84 = scmp.eq.s32.totalorder %s23, 1
      %p85 = por %p83, %p84
      %p86 = scmp.ne.s32.totalorder %s77, %s78
      %p87 = scmp.eq.s32.totalorder %s23, 0
      %p88 = por %p86, %p87
      %p89 = scmp.ne.s32.totalorder %s77, %s78
      %p90 = scmp.eq.s32.totalorder %s24, 1
      %p91 = por %p89, %p90
      %p93 = scmp.ne.s32.totalorder %s78, %s92
      %p94 = scmp.eq.s32.totalorder %s24, 0
      %p95 = por %p93, %p94
      %s97 = sadd.s32 %s96, 1
      %p100 = scmp.eq.s32.totalorder %s18, 1
      %p101 = scmp.ne.s32.totalorder %s96, %s98
      %p102 = scmp.eq.s32.totalorder %s18, 0
      %p103 = por %p101, %p102
      %p104 = scmp.ne.s32.totalorder %s96, %s98
      %p105 = scmp.eq.s32.totalorder %s23, 1
      %p106 = por %p104, %p105
      %p107 = scmp.ne.s32.totalorder %s98, %s99
      %p108 = scmp.eq.s32.totalorder %s23, 0
      %p109 = por %p107, %p108
      %p110 = scmp.ne.s32.totalorder %s98, %s99
      %p111 = scmp.eq.s32.totalorder %s24, 1
      %p112 = por %p110, %p111
      %p114 = scmp.ne.s32.totalorder %s99, %s113
      %p115 = scmp.eq.s32.totalorder %s24, 0
      %p116 = por %p114, %p115
      %s117 = ssub.s32 %s25, %s44
      %s118 = ssub.s32 %s26, %s40
      %s119 = sor.u32 %s117, %s118
      %p120 = scmp.eq.s32.totalorder %s119, 0
      %s122 = sadd.s32 %s121, 1
      %s123 = scalar_select %p120, %s121, %s122
      %p126 = pneg %p120
      %p127 = scmp.eq.s32.totalorder %s18, 1
      %p128 = por %p126, %p127
      %p129 = scmp.ne.s32.totalorder %s121, %s124
      %p130 = scmp.eq.s32.totalorder %s18, 0
      %p131 = por %p129, %p130
      %p132 = scmp.ne.s32.totalorder %s121, %s124
      %p133 = scmp.eq.s32.totalorder %s23, 1
      %p134 = por %p132, %p133
      %p135 = scmp.ne.s32.totalorder %s124, %s125
      %p136 = scmp.eq.s32.totalorder %s23, 0
      %p137 = por %p135, %p136
      %p138 = scmp.ne.s32.totalorder %s124, %s125
      %p139 = scmp.eq.s32.totalorder %s24, 1
      %p140 = por %p138, %p139
      %p142 = scmp.ne.s32.totalorder %s125, %s141
      %p143 = scmp.eq.s32.totalorder %s24, 0
      %p144 = por %p142, %p143
      %s145 = ssub.s32 %s25, %s44
      %s146 = ssub.s32 %s26, %s40
      %s147 = sor.u32 %s145, %s146
      %s148 = ssub.s32 %s27, %s36
      %s149 = sor.u32 %s147, %s148
      %p150 = scmp.eq.s32.totalorder %s149, 0
      %s152 = sadd.s32 %s151, 1
      %s153 = scalar_select %p150, %s151, %s152
      %p156 = pneg %p150
      %p157 = scmp.eq.s32.totalorder %s18, 1
      %p158 = por %p156, %p157
      %p159 = scmp.ne.s32.totalorder %s151, %s154
      %p160 = scmp.eq.s32.totalorder %s18, 0
      %p161 = por %p159, %p160
      %p162 = scmp.ne.s32.totalorder %s151, %s154
      %p163 = scmp.eq.s32.totalorder %s23, 1
      %p164 = por %p162, %p163
      %p165 = scmp.ne.s32.totalorder %s154, %s155
      %p166 = scmp.eq.s32.totalorder %s23, 0
      %p167 = por %p165, %p166
      %p168 = scmp.ne.s32.totalorder %s154, %s155
      %p169 = scmp.eq.s32.totalorder %s24, 1
      %p170 = por %p168, %p169
      %p172 = scmp.ne.s32.totalorder %s155, %s171
      %p173 = scmp.eq.s32.totalorder %s24, 0
      %p174 = por %p172, %p173
      %s175 = ssub.s32 %s25, %s44
      %s176 = ssub.s32 %s26, %s40
      %s177 = sor.u32 %s175, %s176
      %s178 = ssub.s32 %s27, %s36
      %s179 = sor.u32 %s177, %s178
      %p180 = scmp.eq.s32.totalorder %s179, 0
      %s182 = sadd.s32 %s181, 1
      %s183 = scalar_select %p180, %s181, %s182
      %p186 = pneg %p180
      %p187 = scmp.eq.s32.totalorder %s18, 1
      %p188 = por %p186, %p187
      %p189 = scmp.ne.s32.totalorder %s181, %s184
      %p190 = scmp.eq.s32.totalorder %s18, 0
      %p191 = por %p189, %p190
      %p192 = scmp.ne.s32.totalorder %s181, %s184
      %p193 = scmp.eq.s32.totalorder %s23, 1
      %p194 = por %p192, %p193
      %p195 = scmp.ne.s32.totalorder %s184, %s185
      %p196 = scmp.eq.s32.totalorder %s23, 0
      %p197 = por %p195, %p196
      %p198 = scmp.ne.s32.totalorder %s184, %s185
      %p199 = scmp.eq.s32.totalorder %s24, 1
      %p200 = por %p198, %p199
      %p202 = scmp.ne.s32.totalorder %s185, %s201
      %p203 = scmp.eq.s32.totalorder %s24, 0
      %p204 = por %p202, %p203
      %p205 = scmp.le.s32.totalorder 1, %s18
      %p206 = scmp.lt.s32.totalorder %s18, 3
      %p207 = pnand %p205, %p206
      %p208 = pneg %p207
      // Predicated region
      $region9: #{chroma_subsampling.1} parent=5 // pred_check
        _
      $region10: #{chroma_subsampling.1} parent=5 // pred_check_branch
        %210 = sbr.rel (%p207) target = $region12
      $region11: #{chroma_subsampling.1} parent=5 // pred_region
        %s211 = ssub.s32 %s18, 1
        // Predicated region
        $region13: #{chroma_subsampling.1} parent=11 // pred_check
          %p212 = pneg %p88
        $region14: #{chroma_subsampling.1} parent=11 // pred_check_branch
          %214 = sbr.rel (%p212) target = $region16
        $region15: #{chroma_subsampling.1} parent=11 // pred_region
          _
        $region16: #{chroma_subsampling.1} parent=11 // pred_fallthru
          _
        // Predicated region
        $region17: #{chroma_subsampling.1} parent=11 // pred_check
          %p215 = pneg %p109
        $region18: #{chroma_subsampling.1} parent=11 // pred_check_branch
          %217 = sbr.rel (%p215) target = $region20
        $region19: #{chroma_subsampling.1} parent=11 // pred_region
          _
        $region20: #{chroma_subsampling.1} parent=11 // pred_fallthru
          _
      $region12: #{chroma_subsampling.1} parent=5 // pred_fallthru
        _
      %p218 = scmp.lt.s32.totalorder %s18, 2
      // Predicated region
      $region21: #{chroma_subsampling.1} parent=5 // pred_check
        %p219 = pneg %p218
      $region22: #{chroma_subsampling.1} parent=5 // pred_check_branch
        %221 = sbr.rel (%p219) target = $region24
      $region23: #{chroma_subsampling.1} parent=5 // pred_region
        // Predicated region
        $region25: #{chroma_subsampling.1} parent=23 // pred_check
          %p222 = pneg %p61
        $region26: #{chroma_subsampling.1} parent=23 // pred_check_branch
          %224 = sbr.rel (%p222) target = $region28
        $region27: #{chroma_subsampling.1} parent=23 // pred_region
          %p225 = scmp.lt.s32.totalorder %s25, 1
          %s226 = scalar_select %p225, %s25, 1
          %p227 = scmp.lt.s32.totalorder %s26, 0
          %s228 = scalar_select %p227, %s26, 0
          %p229 = scmp.lt.s32.totalorder %s27, 0
          %s230 = scalar_select %p229, %s27, 0
          %s231 = sadd.s32 %s230, %s228
          %s232 = sadd.s32 %s231, %s226
          %s233 = smul.addr %s232, 8
          %s234 = scalar_lea.vmem %s0, %s233
        $region28: #{chroma_subsampling.1} parent=23 // pred_fallthru
          _
      $region24: #{chroma_subsampling.1} parent=5 // pred_fallthru
        _
      %p235 = scmp.le.s32.totalorder 1, %s18
      %p236 = scmp.lt.s32.totalorder %s18, 3
      %p237 = pnand %p235, %p236
      %p238 = pneg %p237
      // Predicated region
      $region29: #{chroma_subsampling.1} parent=5 // pred_check
        _
      $region30: #{chroma_subsampling.1} parent=5 // pred_check_branch
        %240 = sbr.rel (%p237) target = $region32
      $region31: #{chroma_subsampling.1} parent=5 // pred_region
        %s241 = ssub.s32 %s18, 1
        %p242 = scmp.lt.s32.totalorder %s28, 1
        %s243 = scalar_select %p242, %s28, 1
        %p244 = scmp.lt.s32.totalorder %s29, 0
        %s245 = scalar_select %p244, %s29, 0
        %p246 = scmp.lt.s32.totalorder %s30, 0
        %s247 = scalar_select %p246, %s30, 0
        %s248 = sadd.s32 %s247, %s245
        %s249 = sadd.s32 %s248, %s243
        %s250 = smul.addr %s249, 8
        %s251 = scalar_lea.vmem %s0, %s250
        %p252 = pneg %p67
        %p253 = pneg %p64
        %p254 = pneg %p88
        %p255 = pneg %p85
        %p256 = pneg %p109
        %p257 = pneg %p106
        %p258 = pneg %p137
        %p259 = pneg %p134
        %p260 = scmp.lt.s32.totalorder %s28, 1
        %s261 = scalar_select %p260, %s28, 1
        %p262 = scmp.lt.s32.totalorder %s29, 0
        %s263 = scalar_select %p262, %s29, 0
        %s264 = sadd.s32 %s263, %s261
        %s265 = smul.addr %s264, 8
        %s266 = scalar_lea.vmem %s3, %s265
        %p267 = pneg %p167
        %p268 = pneg %p164
        %s269 = sand.u32 %s154, 1
        %s270 = scalar_lea.sflag [#allocation3], %s269
        %s271 = sand.u32 %s154, 1
        %s272 = smul.addr %s271, 8
        %s273 = scalar_lea.vmem [#allocation2], %s272
        %p274 = pneg %p197
        %p275 = pneg %p194
        %s276 = sand.u32 %s184, 1
        %s277 = scalar_lea.sflag [#allocation5], %s276
        %s278 = sand.u32 %s184, 1
        %s279 = smul.addr %s278, 8
        %s280 = scalar_lea.vmem [#allocation4], %s279
        %p281 = scmp.lt.s32.totalorder %s28, 1
        %s282 = scalar_select %p281, %s28, 1
        %p283 = scmp.lt.s32.totalorder %s29, 0
        %s284 = scalar_select %p283, %s29, 0
        %p285 = scmp.lt.s32.totalorder %s30, 0
        %s286 = scalar_select %p285, %s30, 0
        %s287 = sadd.s32 %s286, %s284
        %s288 = sadd.s32 %s287, %s282
        %s289 = smul.addr %s288, 8
        %s290 = scalar_lea.vmem %s0, %s289
        %p291 = scmp.lt.s32.totalorder %s28, 1
        %s292 = scalar_select %p291, %s28, 1
        %p293 = scmp.lt.s32.totalorder %s29, 0
        %s294 = scalar_select %p293, %s29, 0
        %s295 = sadd.s32 %s294, %s292
        %s296 = smul.addr %s295, 8
        %s297 = scalar_lea.vmem %s3, %s296
        %v299 = vld [vmem:[%s290] sm:$0xff]
        %v300 = vld [vmem:[%s1] sm:$0xf]
        %v301 = vld [vmem:[%s1 + $0x4] sm:$0xf]
        %v302 = vld [vmem:[%s1 + $0x8] sm:$0xf]
        %v303 = vld [vmem:[%s1 + $0xc] sm:$0xf]
        %v304 = vld [vmem:[%s1 + $0x10] sm:$0xf]
        %v305 = vld [vmem:[%s1 + $0x14] sm:$0xf]
        %v306 = vld [vmem:[%s2] sm:$0xf]
        %v307 = vld [vmem:[%s2 + $0x4] sm:$0xf]
        %v308 = vld [vmem:[%s2 + $0x8] sm:$0xf]
        %v309 = vld [vmem:[%s2 + $0xc] sm:$0xf]
        %v310 = vld [vmem:[%s2 + $0x10] sm:$0xf]
        %v311 = vld [vmem:[%s2 + $0x14] sm:$0xf]
        %v312 = vpack.c.bf16 %v299, %v299
        %v313 = vunpack.c.l.bf16 %v312
        %v314 = vsub.f32 %v299, %v313
        %v315 = vpack.c.bf16 %v314, %v314
        %v322 = vunpack.c.l.b16 %v300
        %v323 = vunpack.c.l.b16 %v301
        %v324 = vunpack.c.l.b16 %v302
        %v325 = vunpack.c.l.b16 %v303
        %v326 = vunpack.c.l.b16 %v304
        %v327 = vunpack.c.l.b16 %v305
        %v328 = vpack.c.b16 %v323, %v322
        %v329 = vpack.c.b16 %v325, %v324
        %v330 = vpack.c.b16 %v327, %v326
        %vm334 = vcmask 392192
        %v336 = vsel %vm334, %v315, 0
        %338 = vmatprep.subr.bf16.mxu0 0
        %339 = vmatpush1.bf16.msra.mxu0 %v328
        %340 = vmatprep.subr.bf16.mxu0 0
        %341 = vmatpush1.bf16.msra.mxu0 %v329
        %342 = vmatprep.subr.bf16.mxu0 0
        %343 = vmatpush1.bf16.msra.mxu0 %v330
        %344 = vmatprep.subr.bf16.mxu0 0
        %345 = vmatpush1.bf16.msra.mxu0 0
        %346 = vmatprep.subr.bf16.mxu0 0
        %347 = vmatpush1.bf16.msra.mxu0 0
        %348 = vmatprep.subr.bf16.mxu0 0
        %349 = vmatpush1.bf16.msra.mxu0 0
        %350 = vmatprep.subr.bf16.mxu0 0
        %351 = vmatpush1.bf16.msra.mxu0 0
        %352 = vmatprep.subr.bf16.mxu0 0
        %353 = vmatpush1.bf16.msra.mxu0 0
        %354 = vmatprep.subr.bf16.mxu0 0
        %355 = vmatpush1.bf16.msra.mxu0 0
        %356 = vmatprep.subr.bf16.mxu0 0
        %357 = vmatpush1.bf16.msra.mxu0 0
        %358 = vmatprep.subr.bf16.mxu0 0
        %359 = vmatpush1.bf16.msra.mxu0 0
        %360 = vmatprep.subr.bf16.mxu0 0
        %361 = vmatpush1.bf16.msra.mxu0 0
        %362 = vmatprep.subr.bf16.mxu0 0
        %363 = vmatpush1.bf16.msra.mxu0 0
        %364 = vmatprep.subr.bf16.mxu0 0
        %365 = vmatpush1.bf16.msra.mxu0 0
        %366 = vmatprep.subr.bf16.mxu0 0
        %367 = vmatpush1.bf16.msra.mxu0 0
        %368 = vmatprep.subr.bf16.mxu0 0
        %369 = vmatpush1.bf16.msra.mxu0 0
        %370 = vmatprep.mubr.bf16.mxu0 0
        %371 = vmatmul.mubr.bf16.gmra.mrb[0].mxu0 %v336
        %v372 = vpop.f32.mrb[0].mxu0
        %v373 = vadd.f32 0.0, %v372
        %v374 = vpop.f32.mrb[0].mxu0
        %v375 = vpop.f32.mrb[0].mxu0
        %v376 = vpop.f32.mrb[0].mxu0
        %377 = vdwg.mxu0
        %v379 = vsel %vm334, %v312, 0
        %381 = vmatprep.subr.bf16.mxu0 0
        %382 = vmatpush1.bf16.msra.mxu0 %v328
        %383 = vmatprep.subr.bf16.mxu0 0
        %384 = vmatpush1.bf16.msra.mxu0 %v329
        %385 = vmatprep.subr.bf16.mxu0 0
        %386 = vmatpush1.bf16.msra.mxu0 %v330
        %387 = vmatprep.subr.bf16.mxu0 0
        %388 = vmatpush1.bf16.msra.mxu0 0
        %389 = vmatprep.subr.bf16.mxu0 0
        %390 = vmatpush1.bf16.msra.mxu0 0
        %391 = vmatprep.subr.bf16.mxu0 0
        %392 = vmatpush1.bf16.msra.mxu0 0
        %393 = vmatprep.subr.bf16.mxu0 0
        %394 = vmatpush1.bf16.msra.mxu0 0
        %395 = vmatprep.subr.bf16.mxu0 0
        %396 = vmatpush1.bf16.msra.mxu0 0
        %397 = vmatprep.subr.bf16.mxu0 0
        %398 = vmatpush1.bf16.msra.mxu0 0
        %399 = vmatprep.subr.bf16.mxu0 0
        %400 = vmatpush1.bf16.msra.mxu0 0
        %401 = vmatprep.subr.bf16.mxu0 0
        %402 = vmatpush1.bf16.msra.mxu0 0
        %403 = vmatprep.subr.bf16.mxu0 0
        %404 = vmatpush1.bf16.msra.mxu0 0
        %405 = vmatprep.subr.bf16.mxu0 0
        %406 = vmatpush1.bf16.msra.mxu0 0
        %407 = vmatprep.subr.bf16.mxu0 0
        %408 = vmatpush1.bf16.msra.mxu0 0
        %409 = vmatprep.subr.bf16.mxu0 0
        %410 = vmatpush1.bf16.msra.mxu0 0
        %411 = vmatprep.subr.bf16.mxu0 0
        %412 = vmatpush1.bf16.msra.mxu0 0
        %413 = vmatprep.mubr.bf16.mxu0 0
        %414 = vmatmul.mubr.bf16.gmra.mrb[0].mxu0 %v379
        %v415 = vpop.f32.mrb[0].mxu0
        %v416 = vadd.f32 %v373, %v415
        %v417 = vpop.f32.mrb[0].mxu0
        %v418 = vpop.f32.mrb[0].mxu0
        %v419 = vpop.f32.mrb[0].mxu0
        %420 = vdwg.mxu0
        %422 = vrot.lane.b32.xlu0 %v315, 80
        %v423 = vpop.permute.xlu0 %422
        %v425 = vsel %vm334, %v423, 0
        %427 = vmatprep.subr.bf16.mxu0 0
        %428 = vmatpush1.bf16.msra.mxu0 %v328
        %429 = vmatprep.subr.bf16.mxu0 0
        %430 = vmatpush1.bf16.msra.mxu0 %v329
        %431 = vmatprep.subr.bf16.mxu0 0
        %432 = vmatpush1.bf16.msra.mxu0 %v330
        %433 = vmatprep.subr.bf16.mxu0 0
        %434 = vmatpush1.bf16.msra.mxu0 0
        %435 = vmatprep.subr.bf16.mxu0 0
        %436 = vmatpush1.bf16.msra.mxu0 0
        %437 = vmatprep.subr.bf16.mxu0 0
        %438 = vmatpush1.bf16.msra.mxu0 0
        %439 = vmatprep.subr.bf16.mxu0 0
        %440 = vmatpush1.bf16.msra.mxu0 0
        %441 = vmatprep.subr.bf16.mxu0 0
        %442 = vmatpush1.bf16.msra.mxu0 0
        %443 = vmatprep.subr.bf16.mxu0 0
        %444 = vmatpush1.bf16.msra.mxu0 0
        %445 = vmatprep.subr.bf16.mxu0 0
        %446 = vmatpush1.bf16.msra.mxu0 0
        %447 = vmatprep.subr.bf16.mxu0 0
        %448 = vmatpush1.bf16.msra.mxu0 0
        %449 = vmatprep.subr.bf16.mxu0 0
        %450 = vmatpush1.bf16.msra.mxu0 0
        %451 = vmatprep.subr.bf16.mxu0 0
        %452 = vmatpush1.bf16.msra.mxu0 0
        %453 = vmatprep.subr.bf16.mxu0 0
        %454 = vmatpush1.bf16.msra.mxu0 0
        %455 = vmatprep.subr.bf16.mxu0 0
        %456 = vmatpush1.bf16.msra.mxu0 0
        %457 = vmatprep.subr.bf16.mxu0 0
        %458 = vmatpush1.bf16.msra.mxu0 0
        %459 = vmatprep.mubr.bf16.mxu0 0
        %460 = vmatmul.mubr.bf16.gmra.mrb[0].mxu0 %v425
        %v461 = vpop.f32.mrb[0].mxu0
        %v462 = vadd.f32 0.0, %v461
        %v463 = vpop.f32.mrb[0].mxu0
        %v464 = vpop.f32.mrb[0].mxu0
        %v465 = vpop.f32.mrb[0].mxu0
        %466 = vdwg.mxu0
        %468 = vrot.lane.b32.xlu0 %v312, 80
        %v469 = vpop.permute.xlu0 %468
        %v471 = vsel %vm334, %v469, 0
        %473 = vmatprep.subr.bf16.mxu0 0
        %474 = vmatpush1.bf16.msra.mxu0 %v328
        %475 = vmatprep.subr.bf16.mxu0 0
        %476 = vmatpush1.bf16.msra.mxu0 %v329
        %477 = vmatprep.subr.bf16.mxu0 0
        %478 = vmatpush1.bf16.msra.mxu0 %v330
        %479 = vmatprep.subr.bf16.mxu0 0
        %480 = vmatpush1.bf16.msra.mxu0 0
        %481 = vmatprep.subr.bf16.mxu0 0
        %482 = vmatpush1.bf16.msra.mxu0 0
        %483 = vmatprep.subr.bf16.mxu0 0
        %484 = vmatpush1.bf16.msra.mxu0 0
        %485 = vmatprep.subr.bf16.mxu0 0
        %486 = vmatpush1.bf16.msra.mxu0 0
        %487 = vmatprep.subr.bf16.mxu0 0
        %488 = vmatpush1.bf16.msra.mxu0 0
        %489 = vmatprep.subr.bf16.mxu0 0
        %490 = vmatpush1.bf16.msra.mxu0 0
        %491 = vmatprep.subr.bf16.mxu0 0
        %492 = vmatpush1.bf16.msra.mxu0 0
        %493 = vmatprep.subr.bf16.mxu0 0
        %494 = vmatpush1.bf16.msra.mxu0 0
        %495 = vmatprep.subr.bf16.mxu0 0
        %496 = vmatpush1.bf16.msra.mxu0 0
        %497 = vmatprep.subr.bf16.mxu0 0
        %498 = vmatpush1.bf16.msra.mxu0 0
        %499 = vmatprep.subr.bf16.mxu0 0
        %500 = vmatpush1.bf16.msra.mxu0 0
        %501 = vmatprep.subr.bf16.mxu0 0
        %502 = vmatpush1.bf16.msra.mxu0 0
        %503 = vmatprep.subr.bf16.mxu0 0
        %504 = vmatpush1.bf16.msra.mxu0 0
        %505 = vmatprep.mubr.bf16.mxu0 0
        %506 = vmatmul.mubr.bf16.gmra.mrb[0].mxu0 %v471
        %v507 = vpop.f32.mrb[0].mxu0
        %v508 = vadd.f32 %v462, %v507
        %v509 = vpop.f32.mrb[0].mxu0
        %v510 = vpop.f32.mrb[0].mxu0
        %v511 = vpop.f32.mrb[0].mxu0
        %512 = vdwg.mxu0
        %vm513 = vcmask 130048
        %514 = vst.msk [vmem:[%s297] sm:$0xff] %vm513, %v416
        %516 = vrot.lane.b32.xlu0 %v508, 16
        %v517 = vpop.permute.xlu0 %516
        %vm519 = vcmask 261248
        %520 = vst.msk [vmem:[%s297] sm:$0xff] %vm519, %v517
        %522 = vrot.lane.b32.xlu0 %v299, 80
        %v523 = vpop.permute.xlu0 %522
        %v525 = vadd.f32 %v299, %v523
        %v526 = vpack.c.bf16 %v525, %v525
        %v527 = vunpack.c.l.bf16 %v526
        %v528 = vsub.f32 %v525, %v527
        %v529 = vpack.c.bf16 %v528, %v528
        %v536 = vunpack.c.l.b16 %v306
        %v537 = vunpack.c.l.b16 %v307
        %v538 = vunpack.c.l.b16 %v308
        %v539 = vunpack.c.l.b16 %v309
        %v540 = vunpack.c.l.b16 %v310
        %v541 = vunpack.c.l.b16 %v311
        %v542 = vpack.c.b16 %v537, %v536
        %v543 = vpack.c.b16 %v539, %v538
        %v544 = vpack.c.b16 %v541, %v540
        %v549 = vsel %vm334, %v529, 0
        %551 = vmatprep.subr.bf16.mxu0 0
        %552 = vmatpush1.bf16.msra.mxu0 %v542
        %553 = vmatprep.subr.bf16.mxu0 0
        %554 = vmatpush1.bf16.msra.mxu0 %v543
        %555 = vmatprep.subr.bf16.mxu0 0
        %556 = vmatpush1.bf16.msra.mxu0 %v544
        %557 = vmatprep.subr.bf16.mxu0 0
        %558 = vmatpush1.bf16.msra.mxu0 0
        %559 = vmatprep.subr.bf16.mxu0 0
        %560 = vmatpush1.bf16.msra.mxu0 0
        %561 = vmatprep.subr.bf16.mxu0 0
        %562 = vmatpush1.bf16.msra.mxu0 0
        %563 = vmatprep.subr.bf16.mxu0 0
        %564 = vmatpush1.bf16.msra.mxu0 0
        %565 = vmatprep.subr.bf16.mxu0 0
        %566 = vmatpush1.bf16.msra.mxu0 0
        %567 = vmatprep.subr.bf16.mxu0 0
        %568 = vmatpush1.bf16.msra.mxu0 0
        %569 = vmatprep.subr.bf16.mxu0 0
        %570 = vmatpush1.bf16.msra.mxu0 0
        %571 = vmatprep.subr.bf16.mxu0 0
        %572 = vmatpush1.bf16.msra.mxu0 0
        %573 = vmatprep.subr.bf16.mxu0 0
        %574 = vmatpush1.bf16.msra.mxu0 0
        %575 = vmatprep.subr.bf16.mxu0 0
        %576 = vmatpush1.bf16.msra.mxu0 0
        %577 = vmatprep.subr.bf16.mxu0 0
        %578 = vmatpush1.bf16.msra.mxu0 0
        %579 = vmatprep.subr.bf16.mxu0 0
        %580 = vmatpush1.bf16.msra.mxu0 0
        %581 = vmatprep.subr.bf16.mxu0 0
        %582 = vmatpush1.bf16.msra.mxu0 0
        %583 = vmatprep.mubr.bf16.mxu0 0
        %584 = vmatmul.mubr.bf16.gmra.mrb[0].mxu0 %v549
        %v585 = vpop.f32.mrb[0].mxu0
        %v586 = vadd.f32 0.0, %v585
        %v587 = vpop.f32.mrb[0].mxu0
        %v588 = vpop.f32.mrb[0].mxu0
        %v589 = vpop.f32.mrb[0].mxu0
        %590 = vdwg.mxu0
        %v592 = vsel %vm334, %v526, 0
        %594 = vmatprep.subr.bf16.mxu0 0
        %595 = vmatpush1.bf16.msra.mxu0 %v542
        %596 = vmatprep.subr.bf16.mxu0 0
        %597 = vmatpush1.bf16.msra.mxu0 %v543
        %598 = vmatprep.subr.bf16.mxu0 0
        %599 = vmatpush1.bf16.msra.mxu0 %v544
        %600 = vmatprep.subr.bf16.mxu0 0
        %601 = vmatpush1.bf16.msra.mxu0 0
        %602 = vmatprep.subr.bf16.mxu0 0
        %603 = vmatpush1.bf16.msra.mxu0 0
        %604 = vmatprep.subr.bf16.mxu0 0
        %605 = vmatpush1.bf16.msra.mxu0 0
        %606 = vmatprep.subr.bf16.mxu0 0
        %607 = vmatpush1.bf16.msra.mxu0 0
        %608 = vmatprep.subr.bf16.mxu0 0
        %609 = vmatpush1.bf16.msra.mxu0 0
        %610 = vmatprep.subr.bf16.mxu0 0
        %611 = vmatpush1.bf16.msra.mxu0 0
        %612 = vmatprep.subr.bf16.mxu0 0
        %613 = vmatpush1.bf16.msra.mxu0 0
        %614 = vmatprep.subr.bf16.mxu0 0
        %615 = vmatpush1.bf16.msra.mxu0 0
        %616 = vmatprep.subr.bf16.mxu0 0
        %617 = vmatpush1.bf16.msra.mxu0 0
        %618 = vmatprep.subr.bf16.mxu0 0
        %619 = vmatpush1.bf16.msra.mxu0 0
        %620 = vmatprep.subr.bf16.mxu0 0
        %621 = vmatpush1.bf16.msra.mxu0 0
        %622 = vmatprep.subr.bf16.mxu0 0
        %623 = vmatpush1.bf16.msra.mxu0 0
        %624 = vmatprep.subr.bf16.mxu0 0
        %625 = vmatpush1.bf16.msra.mxu0 0
        %626 = vmatprep.mubr.bf16.mxu0 0
        %627 = vmatmul.mubr.bf16.gmra.mrb[0].mxu0 %v592
        %v628 = vpop.f32.mrb[0].mxu0
        %v629 = vadd.f32 %v586, %v628
        %v630 = vpop.f32.mrb[0].mxu0
        %v631 = vpop.f32.mrb[0].mxu0
        %v632 = vpop.f32.mrb[0].mxu0
        %633 = vdwg.mxu0
        %vm634 = vcmask 64512
        %635 = vst.msk [vmem:[%s273] sm:$0xff] %vm634, %v629
        %637 = vrot.lane.b32.xlu0 %v629, 120
        %v638 = vpop.permute.xlu0 %637
        %640 = vst.msk [vmem:[%s280] sm:$0xff] %vm634, %v638
        %p641 = scmp.lt.s32.totalorder %s28, 1
        %s642 = scalar_select %p641, %s28, 1
        %p643 = scmp.lt.s32.totalorder %s29, 0
        %s644 = scalar_select %p643, %s29, 0
        %s645 = sadd.s32 %s644, %s642
        %s646 = smul.addr %s645, 8
        %s647 = scalar_lea.vmem %s3, %s646
        %s648 = sand.u32 %s154, 1
        %s649 = scalar_lea.sflag [#allocation3], %s648
        %s650 = sand.u32 %s154, 1
        %s651 = smul.addr %s650, 8
        %s652 = scalar_lea.vmem [#allocation2], %s651
        %s653 = sand.u32 %s184, 1
        %s654 = scalar_lea.sflag [#allocation5], %s653
        %s655 = sand.u32 %s184, 1
        %s656 = smul.addr %s655, 8
        %s657 = scalar_lea.vmem [#allocation4], %s656
        // Predicated region
        $region33: #{chroma_subsampling.1} parent=31 // pred_check
          %p658 = pneg %p134
        $region34: #{chroma_subsampling.1} parent=31 // pred_check_branch
          %660 = sbr.rel (%p658) target = $region36
        $region35: #{chroma_subsampling.1} parent=31 // pred_region
          _
        $region36: #{chroma_subsampling.1} parent=31 // pred_fallthru
          _
        // Predicated region
        $region37: #{chroma_subsampling.1} parent=31 // pred_check
          %p661 = pneg %p164
        $region38: #{chroma_subsampling.1} parent=31 // pred_check_branch
          %663 = sbr.rel (%p661) target = $region40
        $region39: #{chroma_subsampling.1} parent=31 // pred_region
          %s665 = ssub.s32 128, 128
          %666 = vsyncadd %s649, %s665
          %s667 = sadd.s32 %s30, %s29
          %s668 = sadd.s32 %s667, %s28
          %s669 = smul.addr %s668, 128
          %s670 = scalar_lea.hbm %s4, %s669
          %s672 = sshll.u32 %s652, 4
          %s673 = int_to_ptr.vmem [resolvable:$true] %s672
          %675 = dma.vmem_to_hbm [thread:$0]  %s673, 128, %s670, %s649
        $region40: #{chroma_subsampling.1} parent=31 // pred_fallthru
          _
        // Predicated region
        $region41: #{chroma_subsampling.1} parent=31 // pred_check
          %p676 = pneg %p194
        $region42: #{chroma_subsampling.1} parent=31 // pred_check_branch
          %678 = sbr.rel (%p676) target = $region44
        $region43: #{chroma_subsampling.1} parent=31 // pred_region
          %s680 = ssub.s32 128, 128
          %681 = vsyncadd %s654, %s680
          %s682 = sadd.s32 %s30, %s29
          %s683 = sadd.s32 %s682, %s28
          %s684 = smul.addr %s683, 128
          %s685 = scalar_lea.hbm %s5, %s684
          %s687 = sshll.u32 %s657, 4
          %s688 = int_to_ptr.vmem [resolvable:$true] %s687
          %690 = dma.vmem_to_hbm [thread:$0]  %s688, 128, %s685, %s654
        $region44: #{chroma_subsampling.1} parent=31 // pred_fallthru
          _
      $region32: #{chroma_subsampling.1} parent=5 // pred_fallthru
        _
      %p691 = scmp.le.s32.totalorder 2, %s18
      // Predicated region
      $region45: #{chroma_subsampling.1} parent=5 // pred_check
        %p692 = pneg %p691
      $region46: #{chroma_subsampling.1} parent=5 // pred_check_branch
        %694 = sbr.rel (%p692) target = $region48
      $region47: #{chroma_subsampling.1} parent=5 // pred_region
        %s695 = ssub.s32 %s18, 2
        // Predicated region
        $region49: #{chroma_subsampling.1} parent=47 // pred_check
          %p696 = pneg %p140
        $region50: #{chroma_subsampling.1} parent=47 // pred_check_branch
          %698 = sbr.rel (%p696) target = $region52
        $region51: #{chroma_subsampling.1} parent=47 // pred_region
          %p699 = scmp.lt.s32.totalorder %s31, 1
          %s700 = scalar_select %p699, %s31, 1
          %p701 = scmp.lt.s32.totalorder %s32, 0
          %s702 = scalar_select %p701, %s32, 0
          %s703 = sadd.s32 %s702, %s700
          %s704 = smul.addr %s703, 8
          %s705 = scalar_lea.vmem %s3, %s704
        $region52: #{chroma_subsampling.1} parent=47 // pred_fallthru
          _
        // Predicated region
        $region53: #{chroma_subsampling.1} parent=47 // pred_check
          %p706 = pneg %p170
        $region54: #{chroma_subsampling.1} parent=47 // pred_check_branch
          %708 = sbr.rel (%p706) target = $region56
        $region55: #{chroma_subsampling.1} parent=47 // pred_region
          %s709 = sand.u32 %s155, 1
          %s710 = scalar_lea.sflag [#allocation3], %s709
          %s711 = sand.u32 %s155, 1
          %s712 = smul.addr %s711, 8
          %s713 = scalar_lea.vmem [#allocation2], %s712
          %714 = dma.done %s710, 128
        $region56: #{chroma_subsampling.1} parent=47 // pred_fallthru
          _
        // Predicated region
        $region57: #{chroma_subsampling.1} parent=47 // pred_check
          %p715 = pneg %p200
        $region58: #{chroma_subsampling.1} parent=47 // pred_check_branch
          %717 = sbr.rel (%p715) target = $region60
        $region59: #{chroma_subsampling.1} parent=47 // pred_region
          %s718 = sand.u32 %s185, 1
          %s719 = scalar_lea.sflag [#allocation5], %s718
          %s720 = sand.u32 %s185, 1
          %s721 = smul.addr %s720, 8
          %s722 = scalar_lea.vmem [#allocation4], %s721
          %723 = dma.done %s719, 128
        $region60: #{chroma_subsampling.1} parent=47 // pred_fallthru
          _
      $region48: #{chroma_subsampling.1} parent=5 // pred_fallthru
        _
    $region6: #{chroma_subsampling.1} parent=1 // loop_footer
      %s22 = sadd.s32 1, %s18
    $region7: #{chroma_subsampling.1} parent=1 // loop_footer_branch
      %17 = sbr.rel target = $region3
    $region8: #{chroma_subsampling.1} parent=1 // loop_exit
      _
    %724 = vsyncpa [#allocation3], 1
    %s725 = scalar_lea.sflag [#allocation3], 1
    %726 = vsyncpa %s725, 1
    %727 = vsyncpa [#allocation5], 1
    %s728 = scalar_lea.sflag [#allocation5], 1
    %729 = vsyncpa %s728, 1

</llo_original>
